<compile_context>
chip_gen: v6e
topology: v6e:2x2x1
jax: 0.10.0
libtpu: 0.0.40
codegen_flags: <defaults>
</compile_context>

<pallas_src>
import jax
import jax.numpy as jnp
from jax.experimental import pallas as pl
from jax.experimental.pallas import tpu as pltpu

LANE = 128


def _round_up(x, m):
    return (x + m - 1) // m * m


def mlp_kernel(x_ref, w1_ref, b1_ref, w2_ref, b2_ref, w3_ref, b3_ref, o_ref):
    x = x_ref[...]            # (tm, 3)  -- unpadded input features
    w1 = w1_ref[...]          # (3, 128) -- layer-1 weight rows (lane-padded)

    # ---- Linear(3, 10) + ReLU via VPU FMAs (skip the MXU: only 3 real lanes)
    h1 = (x[:, 0:1] * w1[0:1, :]
          + x[:, 1:2] * w1[1:2, :]
          + x[:, 2:3] * w1[2:3, :]
          + b1_ref[...])                                    # (tm,128)+(1,128)
    h1 = jnp.maximum(h1, 0.0)

    # ---- Linear(10, 10) + ReLU  (lane-padded 128x128 MXU pass, f32 acc)
    h2 = jnp.dot(h1, w2_ref[...], preferred_element_type=jnp.float32) + b2_ref[...]
    h2 = jnp.maximum(h2, 0.0)

    # ---- Linear(10, 10); store only the 10 real output lanes (narrow output)
    h3 = jnp.dot(h2, w3_ref[...], preferred_element_type=jnp.float32) + b3_ref[...]
    o_ref[...] = h3[:, : o_ref.shape[1]].astype(o_ref.dtype)


def _pad_lanes(a, cols):
    """Zero-pad the last axis of a 2-D array up to `cols`."""
    return jnp.pad(a, ((0, 0), (0, cols - a.shape[1])))


@jax.jit
def mlp_forward(x, w1, b1, w2, b2, w3, b3):
    n, in_f = x.shape
    hid = w2.shape[0]          # 10
    out_f = w3.shape[1]        # 10

    # Row tiling: tile of up to 512 rows (multiple of 8); pad rows only.
    tm = min(512, _round_up(n, 8))
    n_pad = _round_up(n, tm)
    x_p = x if n_pad == n else jnp.pad(x, ((0, n_pad - n), (0, 0)))

    # Lane-pad weight/bias feature axes to 128 (exact: padded lanes stay 0).
    w1_p = _pad_lanes(w1, LANE)                                # (3, 128)
    w2_p = jnp.pad(w2, ((0, LANE - hid), (0, LANE - w2.shape[1])))   # (128, 128)
    w3_p = jnp.pad(w3, ((0, LANE - hid), (0, LANE - out_f)))         # (128, 128)
    b1_p = _pad_lanes(b1, LANE)                                # (1, 128)
    b2_p = _pad_lanes(b2, LANE)
    b3_p = _pad_lanes(b3, LANE)

    const2 = lambda i: (0, 0)   # weights/biases: VMEM-resident across grid steps
    out_p = pl.pallas_call(
        mlp_kernel,
        out_shape=jax.ShapeDtypeStruct((n_pad, out_f), jnp.float32),
        grid=(n_pad // tm,),
        in_specs=[
            pl.BlockSpec((tm, in_f), lambda i: (i, 0)),  # x rows tiled, unpadded lanes
            pl.BlockSpec(w1_p.shape, const2),
            pl.BlockSpec(b1_p.shape, const2),
            pl.BlockSpec(w2_p.shape, const2),
            pl.BlockSpec(b2_p.shape, const2),
            pl.BlockSpec(w3_p.shape, const2),
            pl.BlockSpec(b3_p.shape, const2),
        ],
        out_specs=pl.BlockSpec((tm, out_f), lambda i: (i, 0)),  # narrow (N,10) output
        compiler_params=pltpu.CompilerParams(
            dimension_semantics=("parallel",)),                 # 2 TCs on v7x for big N
    )(x_p, w1_p, b1_p, w2_p, b2_p, w3_p, b3_p)

    return out_p if n_pad == n else out_p[:n]


def init_linear(key, in_f, out_f):
    # PyTorch default init: U(-1/sqrt(in_f), 1/sqrt(in_f)) for W and b.
    kw, kb = jax.random.split(key)
    bound = 1.0 / jnp.sqrt(float(in_f))
    w = jax.random.uniform(kw, (in_f, out_f), jnp.float32, -bound, bound)  # (in, out) = W^T
    b = jax.random.uniform(kb, (1, out_f), jnp.float32, -bound, bound)
    return w, b


def _reference(x, w1, b1, w2, b2, w3, b3):
    h = jnp.maximum(x @ w1 + b1, 0.0)
    h = jnp.maximum(h @ w2 + b2, 0.0)
    return h @ w3 + b3


if __name__ == "__main__":
    key = jax.random.PRNGKey(0)
    kx, kb, k1, k2, k3 = jax.random.split(key, 5)

    w1, b1 = init_linear(k1, 3, 10)
    w2, b2 = init_linear(k2, 10, 10)
    w3, b3 = init_linear(k3, 10, 10)

    # Case 1: exact module input shape, x1 = torch.randn(1, 3)
    x_single = jax.random.normal(kx, (1, 3), jnp.float32)
    out_single = mlp_forward(x_single, w1, b1, w2, b2, w3, b3)
    jax.block_until_ready(out_single)
    ref_single = _reference(x_single, w1, b1, w2, b2, w3, b3)
    assert out_single.shape == (1, 10)
    assert jnp.allclose(out_single, ref_single, atol=1e-5, rtol=1e-5)

    # Case 2: small batched input to exercise the row grid / parallel axis.
    x_batch = jax.random.normal(kb, (16, 3), jnp.float32)
    out_batch = mlp_forward(x_batch, w1, b1, w2, b2, w3, b3)
    jax.block_until_ready(out_batch)
    ref_batch = _reference(x_batch, w1, b1, w2, b2, w3, b3)
    assert out_batch.shape == (16, 10)
    assert jnp.allclose(out_batch, ref_batch, atol=1e-5, rtol=1e-5)

    print("KERNEL_OK")
</pallas_src>

<mosaic_0001>
module attributes {stable_mosaic.version = 11 : i64} {
  func.func @mlp_kernel(%arg0: i32, %arg1: memref<8x3xf32, #tpu.memory_space<vmem>>, %arg2: memref<3x128xf32, #tpu.memory_space<vmem>>, %arg3: memref<1x128xf32, #tpu.memory_space<vmem>>, %arg4: memref<128x128xf32, #tpu.memory_space<vmem>>, %arg5: memref<1x128xf32, #tpu.memory_space<vmem>>, %arg6: memref<128x128xf32, #tpu.memory_space<vmem>>, %arg7: memref<1x128xf32, #tpu.memory_space<vmem>>, %arg8: memref<8x10xf32, #tpu.memory_space<vmem>>) attributes {dimension_semantics = [#tpu.dimension_semantics<parallel>], iteration_bounds = array<i64: 1>, scalar_prefetch = 0 : i64, scratch_operands = 0 : i64, tpu.core_type = #tpu.core_type<tc>, window_params = [{transform_indices = @transform_0, window_bounds = array<i64: 8, 3>}, {pipeline_mode = #tpu.pipeline_mode<synchronous>, transform_indices = @transform_1, window_bounds = array<i64: 3, 128>}, {pipeline_mode = #tpu.pipeline_mode<synchronous>, transform_indices = @transform_2, window_bounds = array<i64: 1, 128>}, {pipeline_mode = #tpu.pipeline_mode<synchronous>, transform_indices = @transform_3, window_bounds = array<i64: 128, 128>}, {pipeline_mode = #tpu.pipeline_mode<synchronous>, transform_indices = @transform_4, window_bounds = array<i64: 1, 128>}, {pipeline_mode = #tpu.pipeline_mode<synchronous>, transform_indices = @transform_5, window_bounds = array<i64: 128, 128>}, {pipeline_mode = #tpu.pipeline_mode<synchronous>, transform_indices = @transform_6, window_bounds = array<i64: 1, 128>}, {transform_indices = @transform_7, window_bounds = array<i64: 8, 10>}]} {
    %c0 = arith.constant 0 : index
    %c0_0 = arith.constant 0 : index
    %0 = vector.load %arg1[%c0, %c0_0] : memref<8x3xf32, #tpu.memory_space<vmem>>, vector<8x3xf32>
    %c0_1 = arith.constant 0 : index
    %c0_2 = arith.constant 0 : index
    %1 = vector.load %arg2[%c0_1, %c0_2] : memref<3x128xf32, #tpu.memory_space<vmem>>, vector<3x128xf32>
    %2 = vector.extract_strided_slice %0 {offsets = [0, 0], sizes = [8, 1], strides = [1, 1]} : vector<8x3xf32> to vector<8x1xf32>
    %3 = vector.extract_strided_slice %1 {offsets = [0, 0], sizes = [1, 128], strides = [1, 1]} : vector<3x128xf32> to vector<1x128xf32>
    %4 = vector.broadcast %2 : vector<8x1xf32> to vector<8x128xf32>
    %5 = vector.broadcast %3 : vector<1x128xf32> to vector<8x128xf32>
    %6 = arith.mulf %4, %5 : vector<8x128xf32>
    %7 = vector.extract_strided_slice %0 {offsets = [0, 1], sizes = [8, 1], strides = [1, 1]} : vector<8x3xf32> to vector<8x1xf32>
    %8 = vector.extract_strided_slice %1 {offsets = [1, 0], sizes = [1, 128], strides = [1, 1]} : vector<3x128xf32> to vector<1x128xf32>
    %9 = vector.broadcast %7 : vector<8x1xf32> to vector<8x128xf32>
    %10 = vector.broadcast %8 : vector<1x128xf32> to vector<8x128xf32>
    %11 = arith.mulf %9, %10 : vector<8x128xf32>
    %12 = arith.addf %6, %11 : vector<8x128xf32>
    %13 = vector.extract_strided_slice %0 {offsets = [0, 2], sizes = [8, 1], strides = [1, 1]} : vector<8x3xf32> to vector<8x1xf32>
    %14 = vector.extract_strided_slice %1 {offsets = [2, 0], sizes = [1, 128], strides = [1, 1]} : vector<3x128xf32> to vector<1x128xf32>
    %15 = vector.broadcast %13 : vector<8x1xf32> to vector<8x128xf32>
    %16 = vector.broadcast %14 : vector<1x128xf32> to vector<8x128xf32>
    %17 = arith.mulf %15, %16 : vector<8x128xf32>
    %18 = arith.addf %12, %17 : vector<8x128xf32>
    %c0_3 = arith.constant 0 : index
    %c0_4 = arith.constant 0 : index
    %19 = vector.load %arg3[%c0_3, %c0_4] : memref<1x128xf32, #tpu.memory_space<vmem>>, vector<1x128xf32>
    %20 = vector.broadcast %19 : vector<1x128xf32> to vector<8x128xf32>
    %21 = arith.addf %18, %20 : vector<8x128xf32>
    %cst = arith.constant 0.000000e+00 : f32
    %22 = vector.broadcast %cst : f32 to vector<8x128xf32>
    %23 = arith.maximumf %21, %22 : vector<8x128xf32>
    %c0_5 = arith.constant 0 : index
    %c0_6 = arith.constant 0 : index
    %24 = vector.load %arg4[%c0_5, %c0_6] : memref<128x128xf32, #tpu.memory_space<vmem>>, vector<128x128xf32>
    %cst_7 = arith.constant dense<0.000000e+00> : vector<8x128xf32>
    %25 = tpu.matmul %23, %24, %cst_7 {dimension_numbers = #tpu.dot_dimension_numbers<[1], [0], [0], [1], [0, 0, 1, 1], [], []>} : vector<8x128xf32>, vector<128x128xf32>, vector<8x128xf32> -> vector<8x128xf32>
    %c0_8 = arith.constant 0 : index
    %c0_9 = arith.constant 0 : index
    %26 = vector.load %arg5[%c0_8, %c0_9] : memref<1x128xf32, #tpu.memory_space<vmem>>, vector<1x128xf32>
    %27 = vector.broadcast %26 : vector<1x128xf32> to vector<8x128xf32>
    %28 = arith.addf %25, %27 : vector<8x128xf32>
    %cst_10 = arith.constant 0.000000e+00 : f32
    %29 = vector.broadcast %cst_10 : f32 to vector<8x128xf32>
    %30 = arith.maximumf %28, %29 : vector<8x128xf32>
    %c0_11 = arith.constant 0 : index
    %c0_12 = arith.constant 0 : index
    %31 = vector.load %arg6[%c0_11, %c0_12] : memref<128x128xf32, #tpu.memory_space<vmem>>, vector<128x128xf32>
    %cst_13 = arith.constant dense<0.000000e+00> : vector<8x128xf32>
    %32 = tpu.matmul %30, %31, %cst_13 {dimension_numbers = #tpu.dot_dimension_numbers<[1], [0], [0], [1], [0, 0, 1, 1], [], []>} : vector<8x128xf32>, vector<128x128xf32>, vector<8x128xf32> -> vector<8x128xf32>
    %c0_14 = arith.constant 0 : index
    %c0_15 = arith.constant 0 : index
    %33 = vector.load %arg7[%c0_14, %c0_15] : memref<1x128xf32, #tpu.memory_space<vmem>>, vector<1x128xf32>
    %34 = vector.broadcast %33 : vector<1x128xf32> to vector<8x128xf32>
    %35 = arith.addf %32, %34 : vector<8x128xf32>
    %36 = vector.extract_strided_slice %35 {offsets = [0, 0], sizes = [8, 10], strides = [1, 1]} : vector<8x128xf32> to vector<8x10xf32>
    %c0_16 = arith.constant 0 : index
    %c0_17 = arith.constant 0 : index
    %37 = vector.load %arg8[%c0_16, %c0_17] : memref<8x10xf32, #tpu.memory_space<vmem>>, vector<8x10xf32>
    tpu.vector_store %arg8[%c0_16, %c0_17], %36 {strides = array<i32>} : memref<8x10xf32, #tpu.memory_space<vmem>>, vector<8x10xf32>,
    return
  }
  func.func @transform_0(%arg0: i32) -> (i32, i32) {
    %c0_i32 = arith.constant 0 : i32
    %c0_i32_0 = arith.constant 0 : i32
    return %arg0, %c0_i32 : i32, i32
  }
  func.func @transform_1(%arg0: i32) -> (i32, i32) {
    %c0_i32 = arith.constant 0 : i32
    %c0_i32_0 = arith.constant 0 : i32
    %c0_i32_1 = arith.constant 0 : i32
    return %c0_i32, %c0_i32_0 : i32, i32
  }
  func.func @transform_2(%arg0: i32) -> (i32, i32) {
    %c0_i32 = arith.constant 0 : i32
    %c0_i32_0 = arith.constant 0 : i32
    %c0_i32_1 = arith.constant 0 : i32
    return %c0_i32, %c0_i32_0 : i32, i32
  }
  func.func @transform_3(%arg0: i32) -> (i32, i32) {
    %c0_i32 = arith.constant 0 : i32
    %c0_i32_0 = arith.constant 0 : i32
    %c0_i32_1 = arith.constant 0 : i32
    return %c0_i32, %c0_i32_0 : i32, i32
  }
  func.func @transform_4(%arg0: i32) -> (i32, i32) {
    %c0_i32 = arith.constant 0 : i32
    %c0_i32_0 = arith.constant 0 : i32
    %c0_i32_1 = arith.constant 0 : i32
    return %c0_i32, %c0_i32_0 : i32, i32
  }
  func.func @transform_5(%arg0: i32) -> (i32, i32) {
    %c0_i32 = arith.constant 0 : i32
    %c0_i32_0 = arith.constant 0 : i32
    %c0_i32_1 = arith.constant 0 : i32
    return %c0_i32, %c0_i32_0 : i32, i32
  }
  func.func @transform_6(%arg0: i32) -> (i32, i32) {
    %c0_i32 = arith.constant 0 : i32
    %c0_i32_0 = arith.constant 0 : i32
    %c0_i32_1 = arith.constant 0 : i32
    return %c0_i32, %c0_i32_0 : i32, i32
  }
  func.func @transform_7(%arg0: i32) -> (i32, i32) {
    %c0_i32 = arith.constant 0 : i32
    %c0_i32_0 = arith.constant 0 : i32
    return %arg0, %c0_i32 : i32, i32
  }
}

</mosaic_0001>

<llo_original>
// kernel: mlp_forward.1
$region0: #{mlp_forward.1}
  #allocation0 [shape = 'u32[]', space=smem, size = 0x4, offset = 0x4, fixed_abs, tag = 'smem constant byte address 0x4 - core index']
  #allocation1 [shape = 'u32[144,128]{1,0:T(1,128)}', space=vmem, size = 0x12000, scoped, tag = 'internal scratch']
  %s0 = inlined_call_operand.vmem [shape: f32[8,3], index: 0, kind: input, shape index: {}]
  %s1 = inlined_call_operand.vmem [shape: f32[3,128], index: 1, kind: input, shape index: {}]
  %s2 = inlined_call_operand.vmem [shape: f32[1,128], index: 2, kind: input, shape index: {}]
  %s3 = inlined_call_operand.vmem [shape: f32[128,128], index: 3, kind: input, shape index: {}]
  %s4 = inlined_call_operand.vmem [shape: f32[1,128], index: 4, kind: input, shape index: {}]
  %s5 = inlined_call_operand.vmem [shape: f32[128,128], index: 5, kind: input, shape index: {}]
  %s6 = inlined_call_operand.vmem [shape: f32[1,128], index: 6, kind: input, shape index: {}]
  %s7 = inlined_call_operand.vmem [shape: f32[8,10], index: 7, kind: output, shape index: {}]
  %s8 = sld [smem:[#allocation0]]
  $region38: #{mlp_forward.1} parent=0
    _
  %s10 = ssub.s32 1, %s8
  %s11 = scalar_select 0, %s10, %s8
  // Predicated region
  $region2: #{mlp_forward.1} parent=0 // pred_check
    _
  $region3: #{mlp_forward.1} parent=0 // pred_check_branch
    %13 = sbr.rel (0) target = $region5
  $region4: #{mlp_forward.1} parent=0 // pred_region
    _
  $region5: #{mlp_forward.1} parent=0 // pred_fallthru
    _
  // Predicated region
  $region6: #{mlp_forward.1} parent=0 // pred_check
    _
  $region7: #{mlp_forward.1} parent=0 // pred_check_branch
    %15 = sbr.rel (0) target = $region9
  $region8: #{mlp_forward.1} parent=0 // pred_region
    _
  $region9: #{mlp_forward.1} parent=0 // pred_fallthru
    _
  // Predicated region
  $region10: #{mlp_forward.1} parent=0 // pred_check
    _
  $region11: #{mlp_forward.1} parent=0 // pred_check_branch
    %17 = sbr.rel (0) target = $region13
  $region12: #{mlp_forward.1} parent=0 // pred_region
    _
  $region13: #{mlp_forward.1} parent=0 // pred_fallthru
    _
  // Predicated region
  $region14: #{mlp_forward.1} parent=0 // pred_check
    _
  $region15: #{mlp_forward.1} parent=0 // pred_check_branch
    %19 = sbr.rel (0) target = $region17
  $region16: #{mlp_forward.1} parent=0 // pred_region
    _
  $region17: #{mlp_forward.1} parent=0 // pred_fallthru
    _
  // Predicated region
  $region18: #{mlp_forward.1} parent=0 // pred_check
    _
  $region19: #{mlp_forward.1} parent=0 // pred_check_branch
    %21 = sbr.rel (0) target = $region21
  $region20: #{mlp_forward.1} parent=0 // pred_region
    _
  $region21: #{mlp_forward.1} parent=0 // pred_fallthru
    _
  // Predicated region
  $region22: #{mlp_forward.1} parent=0 // pred_check
    _
  $region23: #{mlp_forward.1} parent=0 // pred_check_branch
    %23 = sbr.rel (0) target = $region25
  $region24: #{mlp_forward.1} parent=0 // pred_region
    _
  $region25: #{mlp_forward.1} parent=0 // pred_fallthru
    _
  // Predicated region
  $region26: #{mlp_forward.1} parent=0 // pred_check
    _
  $region27: #{mlp_forward.1} parent=0 // pred_check_branch
    %25 = sbr.rel (0) target = $region29
  $region28: #{mlp_forward.1} parent=0 // pred_region
    _
  $region29: #{mlp_forward.1} parent=0 // pred_fallthru
    _
  %v26 = vld [vmem:[%s0] sm:$0xff]
  %v27 = vld [vmem:[%s1] sm:$0x7]
  %29 = vset.pattern.permute.xlu0 0
  %30 = vperm.xlu0 %29, %v26
  %v31 = vpop.permute.xlu0 %30
  %v33 = vlaneseq
  %v34 = vshrl.u32 %v33, 7
  %v35 = vsub.s32 0, %v34
  %v36 = vrot.slane %v27, %v35
  %v37 = vmul.f32 %v31, %v36
  %38 = vset.pattern.permute.xlu0 1
  %39 = vperm.xlu0 %38, %v26
  %v40 = vpop.permute.xlu0 %39
  %v42 = vlaneseq
  %v43 = vshrl.u32 %v42, 7
  %v44 = vsub.s32 1, %v43
  %v45 = vrot.slane %v27, %v44
  %v46 = vmul.f32 %v40, %v45
  %v47 = vadd.f32 %v37, %v46
  %48 = vset.pattern.permute.xlu0 2
  %49 = vperm.xlu0 %48, %v26
  %v50 = vpop.permute.xlu0 %49
  %v52 = vlaneseq
  %v53 = vshrl.u32 %v52, 7
  %v54 = vsub.s32 2, %v53
  %v55 = vrot.slane %v27, %v54
  %v56 = vmul.f32 %v50, %v55
  %v57 = vadd.f32 %v47, %v56
  %v58 = vld [vmem:[%s2] sm:$0x1]
  %v60 = vlaneseq
  %v61 = vshrl.u32 %v60, 7
  %v62 = vsub.s32 0, %v61
  %v63 = vrot.slane %v58, %v62
  %v65 = vadd.f32 %v57, %v63
  %v66 = vmax.f32 %v65, 0.0
  %v67 = vld [vmem:[%s3] sm:$0xff]
  %v68 = vld [vmem:[%s3 + $0x8] sm:$0xff]
  %v69 = vld [vmem:[%s3 + $0x10] sm:$0xff]
  %v70 = vld [vmem:[%s3 + $0x18] sm:$0xff]
  %v71 = vld [vmem:[%s3 + $0x20] sm:$0xff]
  %v72 = vld [vmem:[%s3 + $0x28] sm:$0xff]
  %v73 = vld [vmem:[%s3 + $0x30] sm:$0xff]
  %v74 = vld [vmem:[%s3 + $0x38] sm:$0xff]
  %v75 = vld [vmem:[%s3 + $0x40] sm:$0xff]
  %v76 = vld [vmem:[%s3 + $0x48] sm:$0xff]
  %v77 = vld [vmem:[%s3 + $0x50] sm:$0xff]
  %v78 = vld [vmem:[%s3 + $0x58] sm:$0xff]
  %v79 = vld [vmem:[%s3 + $0x60] sm:$0xff]
  %v80 = vld [vmem:[%s3 + $0x68] sm:$0xff]
  %v81 = vld [vmem:[%s3 + $0x70] sm:$0xff]
  %v82 = vld [vmem:[%s3 + $0x78] sm:$0xff]
  %v83 = vld [vmem:[%s4] sm:$0x1]
  %v85 = vlaneseq
  %v86 = vshrl.u32 %v85, 7
  %v87 = vsub.s32 0, %v86
  %v88 = vrot.slane %v83, %v87
  %90 = vmatprep.subr.mxu0 0.0
  %91 = vmatpush1.msra.mxu0 %v82
  %92 = vmatprep.subr.mxu0 0.0
  %93 = vmatpush1.msra.mxu0 %v81
  %94 = vmatprep.subr.mxu0 0.0
  %95 = vmatpush1.msra.mxu0 %v80
  %96 = vmatprep.subr.mxu0 0.0
  %97 = vmatpush1.msra.mxu0 %v79
  %98 = vmatprep.subr.mxu0 0.0
  %99 = vmatpush1.msra.mxu0 %v78
  %100 = vmatprep.subr.mxu0 0.0
  %101 = vmatpush1.msra.mxu0 %v77
  %102 = vmatprep.subr.mxu0 0.0
  %103 = vmatpush1.msra.mxu0 %v76
  %104 = vmatprep.subr.mxu0 0.0
  %105 = vmatpush1.msra.mxu0 %v75
  %106 = vmatprep.subr.mxu0 0.0
  %107 = vmatpush1.msra.mxu0 %v74
  %108 = vmatprep.subr.mxu0 0.0
  %109 = vmatpush1.msra.mxu0 %v73
  %110 = vmatprep.subr.mxu0 0.0
  %111 = vmatpush1.msra.mxu0 %v72
  %112 = vmatprep.subr.mxu0 0.0
  %113 = vmatpush1.msra.mxu0 %v71
  %114 = vmatprep.subr.mxu0 0.0
  %115 = vmatpush1.msra.mxu0 %v70
  %116 = vmatprep.subr.mxu0 0.0
  %117 = vmatpush1.msra.mxu0 %v69
  %118 = vmatprep.subr.mxu0 0.0
  %119 = vmatpush1.msra.mxu0 %v68
  %120 = vmatprep.subr.mxu0 0.0
  %121 = vmatpush1.msra.mxu0 %v67
  %122 = vmatprep.subr.mxu0 0.0
  %123 = vmatpush2.msra.mxu0 0.0
  %124 = vmatprep.subr.mxu0 0.0
  %125 = vmatpush2.msra.mxu0 0.0
  %126 = vmatprep.subr.mxu0 0.0
  %127 = vmatpush2.msra.mxu0 0.0
  %128 = vmatprep.subr.mxu0 0.0
  %129 = vmatpush2.msra.mxu0 0.0
  %130 = vmatprep.subr.mxu0 0.0
  %131 = vmatpush2.msra.mxu0 0.0
  %132 = vmatprep.subr.mxu0 0.0
  %133 = vmatpush2.msra.mxu0 0.0
  %134 = vmatprep.subr.mxu0 0.0
  %135 = vmatpush2.msra.mxu0 0.0
  %136 = vmatprep.subr.mxu0 0.0
  %137 = vmatpush2.msra.mxu0 0.0
  %138 = vmatprep.subr.mxu0 0.0
  %139 = vmatpush2.msra.mxu0 0.0
  %140 = vmatprep.subr.mxu0 0.0
  %141 = vmatpush2.msra.mxu0 0.0
  %142 = vmatprep.subr.mxu0 0.0
  %143 = vmatpush2.msra.mxu0 0.0
  %144 = vmatprep.subr.mxu0 0.0
  %145 = vmatpush2.msra.mxu0 0.0
  %146 = vmatprep.subr.mxu0 0.0
  %147 = vmatpush2.msra.mxu0 0.0
  %148 = vmatprep.subr.mxu0 0.0
  %149 = vmatpush2.msra.mxu0 0.0
  %150 = vmatprep.subr.mxu0 0.0
  %151 = vmatpush2.msra.mxu0 0.0
  %152 = vmatprep.subr.mxu0 0.0
  %153 = vmatpush2.msra.mxu0 0.0
  %154 = vmatprep.mubr.f32.mxu0 0.0
  %155 = vmatmul.mubr.f32.gmra.mxu0 %v66
  %v156 = vpop.f32.mrf.mxu0
  %v157 = vadd.f32 %v88, %v156
  %v158 = vpop.f32.mrf.mxu0
  %159 = vdwg.mxu0
  %v160 = vmax.f32 %v157, 0.0
  %v161 = vld [vmem:[%s5] sm:$0xff]
  %v162 = vld [vmem:[%s5 + $0x8] sm:$0xff]
  %v163 = vld [vmem:[%s5 + $0x10] sm:$0xff]
  %v164 = vld [vmem:[%s5 + $0x18] sm:$0xff]
  %v165 = vld [vmem:[%s5 + $0x20] sm:$0xff]
  %v166 = vld [vmem:[%s5 + $0x28] sm:$0xff]
  %v167 = vld [vmem:[%s5 + $0x30] sm:$0xff]
  %v168 = vld [vmem:[%s5 + $0x38] sm:$0xff]
  %v169 = vld [vmem:[%s5 + $0x40] sm:$0xff]
  %v170 = vld [vmem:[%s5 + $0x48] sm:$0xff]
  %v171 = vld [vmem:[%s5 + $0x50] sm:$0xff]
  %v172 = vld [vmem:[%s5 + $0x58] sm:$0xff]
  %v173 = vld [vmem:[%s5 + $0x60] sm:$0xff]
  %v174 = vld [vmem:[%s5 + $0x68] sm:$0xff]
  %v175 = vld [vmem:[%s5 + $0x70] sm:$0xff]
  %v176 = vld [vmem:[%s5 + $0x78] sm:$0xff]
  %v177 = vld [vmem:[%s6] sm:$0x1]
  %v179 = vlaneseq
  %v180 = vshrl.u32 %v179, 7
  %v181 = vsub.s32 0, %v180
  %v182 = vrot.slane %v177, %v181
  %184 = vmatprep.subr.mxu0 0.0
  %185 = vmatpush1.msra.mxu0 %v176
  %186 = vmatprep.subr.mxu0 0.0
  %187 = vmatpush1.msra.mxu0 %v175
  %188 = vmatprep.subr.mxu0 0.0
  %189 = vmatpush1.msra.mxu0 %v174
  %190 = vmatprep.subr.mxu0 0.0
  %191 = vmatpush1.msra.mxu0 %v173
  %192 = vmatprep.subr.mxu0 0.0
  %193 = vmatpush1.msra.mxu0 %v172
  %194 = vmatprep.subr.mxu0 0.0
  %195 = vmatpush1.msra.mxu0 %v171
  %196 = vmatprep.subr.mxu0 0.0
  %197 = vmatpush1.msra.mxu0 %v170
  %198 = vmatprep.subr.mxu0 0.0
  %199 = vmatpush1.msra.mxu0 %v169
  %200 = vmatprep.subr.mxu0 0.0
  %201 = vmatpush1.msra.mxu0 %v168
  %202 = vmatprep.subr.mxu0 0.0
  %203 = vmatpush1.msra.mxu0 %v167
  %204 = vmatprep.subr.mxu0 0.0
  %205 = vmatpush1.msra.mxu0 %v166
  %206 = vmatprep.subr.mxu0 0.0
  %207 = vmatpush1.msra.mxu0 %v165
  %208 = vmatprep.subr.mxu0 0.0
  %209 = vmatpush1.msra.mxu0 %v164
  %210 = vmatprep.subr.mxu0 0.0
  %211 = vmatpush1.msra.mxu0 %v163
  %212 = vmatprep.subr.mxu0 0.0
  %213 = vmatpush1.msra.mxu0 %v162
  %214 = vmatprep.subr.mxu0 0.0
  %215 = vmatpush1.msra.mxu0 %v161
  %216 = vmatprep.subr.mxu0 0.0
  %217 = vmatpush2.msra.mxu0 0.0
  %218 = vmatprep.subr.mxu0 0.0
  %219 = vmatpush2.msra.mxu0 0.0
  %220 = vmatprep.subr.mxu0 0.0
  %221 = vmatpush2.msra.mxu0 0.0
  %222 = vmatprep.subr.mxu0 0.0
  %223 = vmatpush2.msra.mxu0 0.0
  %224 = vmatprep.subr.mxu0 0.0
  %225 = vmatpush2.msra.mxu0 0.0
  %226 = vmatprep.subr.mxu0 0.0
  %227 = vmatpush2.msra.mxu0 0.0
  %228 = vmatprep.subr.mxu0 0.0
  %229 = vmatpush2.msra.mxu0 0.0
  %230 = vmatprep.subr.mxu0 0.0
  %231 = vmatpush2.msra.mxu0 0.0
  %232 = vmatprep.subr.mxu0 0.0
  %233 = vmatpush2.msra.mxu0 0.0
  %234 = vmatprep.subr.mxu0 0.0
  %235 = vmatpush2.msra.mxu0 0.0
  %236 = vmatprep.subr.mxu0 0.0
  %237 = vmatpush2.msra.mxu0 0.0
  %238 = vmatprep.subr.mxu0 0.0
  %239 = vmatpush2.msra.mxu0 0.0
  %240 = vmatprep.subr.mxu0 0.0
  %241 = vmatpush2.msra.mxu0 0.0
  %242 = vmatprep.subr.mxu0 0.0
  %243 = vmatpush2.msra.mxu0 0.0
  %244 = vmatprep.subr.mxu0 0.0
  %245 = vmatpush2.msra.mxu0 0.0
  %246 = vmatprep.subr.mxu0 0.0
  %247 = vmatpush2.msra.mxu0 0.0
  %248 = vmatprep.mubr.f32.mxu0 0.0
  %249 = vmatmul.mubr.f32.gmra.mxu0 %v160
  %v250 = vpop.f32.mrf.mxu0
  %v251 = vadd.f32 %v182, %v250
  %v252 = vpop.f32.mrf.mxu0
  %253 = vdwg.mxu0
  %vm254 = vcmask 80896
  %255 = vst.msk [vmem:[%s7] sm:$0xff] %vm254, %v251
  // Predicated region
  $region30: #{mlp_forward.1} parent=0 // pred_check
    _
  $region31: #{mlp_forward.1} parent=0 // pred_check_branch
    %257 = sbr.rel (0) target = $region33
  $region32: #{mlp_forward.1} parent=0 // pred_region
    _
  $region33: #{mlp_forward.1} parent=0 // pred_fallthru
    _
  // Predicated region
  $region34: #{mlp_forward.1} parent=0 // pred_check
    _
  $region35: #{mlp_forward.1} parent=0 // pred_check_branch
    %259 = sbr.rel (0) target = $region37
  $region36: #{mlp_forward.1} parent=0 // pred_region
    _
  $region37: #{mlp_forward.1} parent=0 // pred_fallthru
    _

</llo_original>
